<compile_context>
chip_gen: v7x
topology: tpu7x:2x2x1
jax: 0.10.0
libtpu: 0.0.40
codegen_flags: <defaults>
</compile_context>

<pallas_src>
import jax
import jax.numpy as jnp
from jax.experimental import pallas as pl
from jax.experimental.pallas import tpu as pltpu


def _layernorm(x, gamma, beta, eps=1e-5):
    mu = jnp.mean(x, axis=-1, keepdims=True)
    xc = x - mu
    var = jnp.mean(xc * xc, axis=-1, keepdims=True)
    return xc * jax.lax.rsqrt(var + eps) * gamma + beta


def self_attention_block_kernel(
    x_ref,
    w_attn_ref, b_attn_ref,      # folded  value -> in_proj_v -> out_proj
    g1_ref, b1_ref,              # LayerNorm1
    w_pf1_ref, b_pf1_ref,        # folded  proj -> ff linear1
    wf2_ref, bf2_ref,            # ff linear2
    g2_ref, b2_ref,              # LayerNorm2
    o_ref,
):
    x = x_ref[...].astype(jnp.float32)

    # attention branch: seq_len == 1 => softmax == 1 => single folded matmul
    attn = jnp.dot(x, w_attn_ref[...], preferred_element_type=jnp.float32) + b_attn_ref[...]
    x1 = _layernorm(x + attn, g1_ref[...], b1_ref[...])

    # proj -> ff linear1 (folded) -> ReLU -> ff linear2
    h = jnp.maximum(
        jnp.dot(x1, w_pf1_ref[...], preferred_element_type=jnp.float32) + b_pf1_ref[...],
        0.0)
    ff = jnp.dot(h, wf2_ref[...], preferred_element_type=jnp.float32) + bf2_ref[...]

    out = _layernorm(x1 + ff, g2_ref[...], b2_ref[...])
    o_ref[...] = out.astype(o_ref.dtype)


_WEIGHT_KEYS = ("w_attn", "b_attn", "g1", "b1", "w_pf1", "b_pf1", "wf2", "bf2", "g2", "b2")


def _row_tile(n):
    """Largest row tile (multiple of 8, <= 512) that evenly divides n."""
    for tm in (512, 256, 128, 64, 32, 16, 8):
        if n >= tm and n % tm == 0:
            return tm
    return n  # small/odd batch: single full-extent block


@jax.jit
def self_attention_block(x, folded):
    N, F = x.shape
    O = folded["wf2"].shape[1]
    TM = _row_tile(N)
    grid = (N // TM,) if N % TM == 0 else (1,)

    weights = [folded[k] for k in _WEIGHT_KEYS]
    in_specs = [pl.BlockSpec((TM, F), lambda i: (i, 0))] + [
        pl.BlockSpec(w.shape, lambda i: (0, 0)) for w in weights   # VMEM-resident weights
    ]
    out_spec = pl.BlockSpec((TM, O), lambda i: (i, 0))

    # NOTE: for very large batches one could cast matmul operands to bf16
    # (keeping f32 accumulation); kept f32 here for bit-faithful semantics.
    return pl.pallas_call(
        self_attention_block_kernel,
        out_shape=jax.ShapeDtypeStruct((N, O), x.dtype),
        grid=grid,
        in_specs=in_specs,
        out_specs=out_spec,
        compiler_params=pltpu.CompilerParams(
            dimension_semantics=("parallel",)),   # shard row tiles across v7x's 2 TCs
    )(x, *weights)


def init_params(key, input_size, output_size, embed_size, num_heads):
    """PyTorch-style (uniform +-1/sqrt(fan_in)) init, weights stored as (in, out)."""
    E = embed_size * num_heads
    H = output_size * 4
    keys = iter(jax.random.split(key, 32))

    def lin(in_f, out_f):
        bound = 1.0 / float(in_f) ** 0.5
        w = jax.random.uniform(next(keys), (in_f, out_f), jnp.float32, -bound, bound)
        b = jax.random.uniform(next(keys), (1, out_f), jnp.float32, -bound, bound)
        return w, b

    p = {}
    # query/key layers exist in the module but are provably dead at seq_len==1
    # (softmax over one key is exactly 1.0); kept for structural fidelity,
    # never passed to the kernel.
    p["wq"], p["bq"] = lin(input_size, E)
    p["wk"], p["bk"] = lin(input_size, E)
    p["wv"], p["bv"] = lin(input_size, E)
    p["win"], p["bin"] = lin(E, 3 * E)      # packed MHA in_proj (stored transposed)
    p["wo"], p["bo"] = lin(E, E)            # MHA out_proj
    p["g1"] = jnp.ones((1, E), jnp.float32)
    p["b1"] = jnp.zeros((1, E), jnp.float32)
    p["wp"], p["bp"] = lin(E, output_size)
    p["wf1"], p["bf1"] = lin(output_size, H)
    p["wf2"], p["bf2"] = lin(H, output_size)
    p["g2"] = jnp.ones((1, output_size), jnp.float32)
    p["b2"] = jnp.zeros((1, output_size), jnp.float32)
    return p


def fold_params(p, embed_size, num_heads):
    """Host-side algebraic folding (runs once); only live parameters survive."""
    E = embed_size * num_heads
    win_v = p["win"][:, 2 * E:3 * E]
    bin_v = p["bin"][:, 2 * E:3 * E]
    w_attn = p["wv"] @ win_v @ p["wo"]
    b_attn = (p["bv"] @ win_v + bin_v) @ p["wo"] + p["bo"]
    w_pf1 = p["wp"] @ p["wf1"]
    b_pf1 = p["bp"] @ p["wf1"] + p["bf1"]
    return {
        "w_attn": w_attn, "b_attn": b_attn,
        "g1": p["g1"], "b1": p["b1"],
        "w_pf1": w_pf1, "b_pf1": b_pf1,
        "wf2": p["wf2"], "bf2": p["bf2"],
        "g2": p["g2"], "b2": p["b2"],
    }


def _reference_forward(x, p):
    """Pure-JAX unfolded reference (mirrors the PyTorch forward, eval mode)."""
    hp = jax.lax.Precision.HIGHEST
    dot = lambda a, b: jnp.dot(a, b, precision=hp)
    E = p["wo"].shape[0]
    v = dot(x, p["wv"]) + p["bv"]
    vp = dot(v, p["win"][:, 2 * E:3 * E]) + p["bin"][:, 2 * E:3 * E]
    attn = dot(vp, p["wo"]) + p["bo"]            # softmax over 1 key == 1
    x1 = _layernorm(x + attn, p["g1"], p["b1"])
    pr = dot(x1, p["wp"]) + p["bp"]
    h = jnp.maximum(dot(pr, p["wf1"]) + p["bf1"], 0.0)
    ff = dot(h, p["wf2"]) + p["bf2"]
    return _layernorm(x1 + ff, p["g2"], p["b2"])


if __name__ == "__main__":
    # Self-consistent shapes: residuals require input_size == E == output_size.
    batch = 32             # from the spec: x = torch.randn(32, 128)
    input_size = 128       # from the spec
    embed_size = 32        # from the spec
    num_heads = 4          # E = embed_size * num_heads = 128 (lane-dense)
    output_size = 128      # must equal E for the second residual to be valid
    # TODO(synk): dropout (p=0.1) inside nn.MultiheadAttention is stochastic in
    # train mode; implemented here as eval-mode identity.

    key = jax.random.PRNGKey(0)
    k_x, k_p = jax.random.split(key)
    x = jax.random.normal(k_x, (batch, input_size), jnp.float32)
    params = init_params(k_p, input_size, output_size, embed_size, num_heads)
    folded = fold_params(params, embed_size, num_heads)

    out = self_attention_block(x, folded)
    jax.block_until_ready(out)
    assert out.shape == (batch, output_size), out.shape

    ref = _reference_forward(x, params)
    assert jnp.allclose(out, ref, rtol=5e-3, atol=5e-3), float(jnp.max(jnp.abs(out - ref)))

    print("KERNEL_OK")
</pallas_src>

<mosaic_0001>
module attributes {stable_mosaic.version = 11 : i64} {
  func.func @self_attention_block_kernel(%arg0: i32, %arg1: memref<32x128xf32, #tpu.memory_space<vmem>>, %arg2: memref<128x128xf32, #tpu.memory_space<vmem>>, %arg3: memref<1x128xf32, #tpu.memory_space<vmem>>, %arg4: memref<1x128xf32, #tpu.memory_space<vmem>>, %arg5: memref<1x128xf32, #tpu.memory_space<vmem>>, %arg6: memref<128x512xf32, #tpu.memory_space<vmem>>, %arg7: memref<1x512xf32, #tpu.memory_space<vmem>>, %arg8: memref<512x128xf32, #tpu.memory_space<vmem>>, %arg9: memref<1x128xf32, #tpu.memory_space<vmem>>, %arg10: memref<1x128xf32, #tpu.memory_space<vmem>>, %arg11: memref<1x128xf32, #tpu.memory_space<vmem>>, %arg12: memref<32x128xf32, #tpu.memory_space<vmem>>) attributes {dimension_semantics = [#tpu.dimension_semantics<parallel>], iteration_bounds = array<i64: 1>, scalar_prefetch = 0 : i64, scratch_operands = 0 : i64, tpu.core_type = #tpu.core_type<tc>, window_params = [{transform_indices = @transform_0, window_bounds = array<i64: 32, 128>}, {pipeline_mode = #tpu.pipeline_mode<synchronous>, transform_indices = @transform_1, window_bounds = array<i64: 128, 128>}, {pipeline_mode = #tpu.pipeline_mode<synchronous>, transform_indices = @transform_2, window_bounds = array<i64: 1, 128>}, {pipeline_mode = #tpu.pipeline_mode<synchronous>, transform_indices = @transform_3, window_bounds = array<i64: 1, 128>}, {pipeline_mode = #tpu.pipeline_mode<synchronous>, transform_indices = @transform_4, window_bounds = array<i64: 1, 128>}, {pipeline_mode = #tpu.pipeline_mode<synchronous>, transform_indices = @transform_5, window_bounds = array<i64: 128, 512>}, {pipeline_mode = #tpu.pipeline_mode<synchronous>, transform_indices = @transform_6, window_bounds = array<i64: 1, 512>}, {pipeline_mode = #tpu.pipeline_mode<synchronous>, transform_indices = @transform_7, window_bounds = array<i64: 512, 128>}, {pipeline_mode = #tpu.pipeline_mode<synchronous>, transform_indices = @transform_8, window_bounds = array<i64: 1, 128>}, {pipeline_mode = #tpu.pipeline_mode<synchronous>, transform_indices = @transform_9, window_bounds = array<i64: 1, 128>}, {pipeline_mode = #tpu.pipeline_mode<synchronous>, transform_indices = @transform_10, window_bounds = array<i64: 1, 128>}, {transform_indices = @transform_11, window_bounds = array<i64: 32, 128>}]} {
    %c0 = arith.constant 0 : index
    %c0_0 = arith.constant 0 : index
    %0 = vector.load %arg1[%c0, %c0_0] : memref<32x128xf32, #tpu.memory_space<vmem>>, vector<32x128xf32>
    %c0_1 = arith.constant 0 : index
    %c0_2 = arith.constant 0 : index
    %1 = vector.load %arg2[%c0_1, %c0_2] : memref<128x128xf32, #tpu.memory_space<vmem>>, vector<128x128xf32>
    %cst = arith.constant dense<0.000000e+00> : vector<32x128xf32>
    %2 = tpu.matmul %0, %1, %cst {dimension_numbers = #tpu.dot_dimension_numbers<[1], [0], [0], [1], [0, 0, 1, 1], [], []>} : vector<32x128xf32>, vector<128x128xf32>, vector<32x128xf32> -> vector<32x128xf32>
    %c0_3 = arith.constant 0 : index
    %c0_4 = arith.constant 0 : index
    %3 = vector.load %arg3[%c0_3, %c0_4] : memref<1x128xf32, #tpu.memory_space<vmem>>, vector<1x128xf32>
    %4 = vector.broadcast %3 : vector<1x128xf32> to vector<32x128xf32>
    %5 = arith.addf %2, %4 : vector<32x128xf32>
    %6 = arith.addf %0, %5 : vector<32x128xf32>
    %c0_5 = arith.constant 0 : index
    %c0_6 = arith.constant 0 : index
    %7 = vector.load %arg4[%c0_5, %c0_6] : memref<1x128xf32, #tpu.memory_space<vmem>>, vector<1x128xf32>
    %c0_7 = arith.constant 0 : index
    %c0_8 = arith.constant 0 : index
    %8 = vector.load %arg5[%c0_7, %c0_8] : memref<1x128xf32, #tpu.memory_space<vmem>>, vector<1x128xf32>
    %cst_9 = arith.constant dense<0.000000e+00> : vector<32xf32>
    %9 = vector.multi_reduction <add>, %6, %cst_9 [1] : vector<32x128xf32> to vector<32xf32>
    %10 = vector.shape_cast %9 : vector<32xf32> to vector<32x1xf32>
    %cst_10 = arith.constant 1.280000e+02 : f32
    %11 = vector.broadcast %cst_10 : f32 to vector<32x1xf32>
    %12 = arith.divf %10, %11 : vector<32x1xf32>
    %13 = vector.broadcast %12 : vector<32x1xf32> to vector<32x128xf32>
    %14 = arith.subf %6, %13 : vector<32x128xf32>
    %15 = arith.mulf %14, %14 : vector<32x128xf32>
    %cst_11 = arith.constant dense<0.000000e+00> : vector<32xf32>
    %16 = vector.multi_reduction <add>, %15, %cst_11 [1] : vector<32x128xf32> to vector<32xf32>
    %17 = vector.shape_cast %16 : vector<32xf32> to vector<32x1xf32>
    %cst_12 = arith.constant 1.280000e+02 : f32
    %18 = vector.broadcast %cst_12 : f32 to vector<32x1xf32>
    %19 = arith.divf %17, %18 : vector<32x1xf32>
    %cst_13 = arith.constant 9.99999974E-6 : f32
    %20 = vector.broadcast %cst_13 : f32 to vector<32x1xf32>
    %21 = arith.addf %19, %20 : vector<32x1xf32>
    %22 = math.rsqrt %21 : vector<32x1xf32>
    %23 = vector.broadcast %22 : vector<32x1xf32> to vector<32x128xf32>
    %24 = arith.mulf %14, %23 : vector<32x128xf32>
    %25 = vector.broadcast %7 : vector<1x128xf32> to vector<32x128xf32>
    %26 = arith.mulf %24, %25 : vector<32x128xf32>
    %27 = vector.broadcast %8 : vector<1x128xf32> to vector<32x128xf32>
    %28 = arith.addf %26, %27 : vector<32x128xf32>
    %c0_14 = arith.constant 0 : index
    %c0_15 = arith.constant 0 : index
    %29 = vector.load %arg6[%c0_14, %c0_15] : memref<128x512xf32, #tpu.memory_space<vmem>>, vector<128x512xf32>
    %cst_16 = arith.constant dense<0.000000e+00> : vector<32x512xf32>
    %30 = tpu.matmul %28, %29, %cst_16 {dimension_numbers = #tpu.dot_dimension_numbers<[1], [0], [0], [1], [0, 0, 1, 1], [], []>} : vector<32x128xf32>, vector<128x512xf32>, vector<32x512xf32> -> vector<32x512xf32>
    %c0_17 = arith.constant 0 : index
    %c0_18 = arith.constant 0 : index
    %31 = vector.load %arg7[%c0_17, %c0_18] : memref<1x512xf32, #tpu.memory_space<vmem>>, vector<1x512xf32>
    %32 = vector.broadcast %31 : vector<1x512xf32> to vector<32x512xf32>
    %33 = arith.addf %30, %32 : vector<32x512xf32>
    %cst_19 = arith.constant 0.000000e+00 : f32
    %34 = vector.broadcast %cst_19 : f32 to vector<32x512xf32>
    %35 = arith.maximumf %33, %34 : vector<32x512xf32>
    %c0_20 = arith.constant 0 : index
    %c0_21 = arith.constant 0 : index
    %36 = vector.load %arg8[%c0_20, %c0_21] : memref<512x128xf32, #tpu.memory_space<vmem>>, vector<512x128xf32>
    %cst_22 = arith.constant dense<0.000000e+00> : vector<32x128xf32>
    %37 = tpu.matmul %35, %36, %cst_22 {dimension_numbers = #tpu.dot_dimension_numbers<[1], [0], [0], [1], [0, 0, 1, 1], [], []>} : vector<32x512xf32>, vector<512x128xf32>, vector<32x128xf32> -> vector<32x128xf32>
    %c0_23 = arith.constant 0 : index
    %c0_24 = arith.constant 0 : index
    %38 = vector.load %arg9[%c0_23, %c0_24] : memref<1x128xf32, #tpu.memory_space<vmem>>, vector<1x128xf32>
    %39 = vector.broadcast %38 : vector<1x128xf32> to vector<32x128xf32>
    %40 = arith.addf %37, %39 : vector<32x128xf32>
    %41 = arith.addf %28, %40 : vector<32x128xf32>
    %c0_25 = arith.constant 0 : index
    %c0_26 = arith.constant 0 : index
    %42 = vector.load %arg10[%c0_25, %c0_26] : memref<1x128xf32, #tpu.memory_space<vmem>>, vector<1x128xf32>
    %c0_27 = arith.constant 0 : index
    %c0_28 = arith.constant 0 : index
    %43 = vector.load %arg11[%c0_27, %c0_28] : memref<1x128xf32, #tpu.memory_space<vmem>>, vector<1x128xf32>
    %cst_29 = arith.constant dense<0.000000e+00> : vector<32xf32>
    %44 = vector.multi_reduction <add>, %41, %cst_29 [1] : vector<32x128xf32> to vector<32xf32>
    %45 = vector.shape_cast %44 : vector<32xf32> to vector<32x1xf32>
    %cst_30 = arith.constant 1.280000e+02 : f32
    %46 = vector.broadcast %cst_30 : f32 to vector<32x1xf32>
    %47 = arith.divf %45, %46 : vector<32x1xf32>
    %48 = vector.broadcast %47 : vector<32x1xf32> to vector<32x128xf32>
    %49 = arith.subf %41, %48 : vector<32x128xf32>
    %50 = arith.mulf %49, %49 : vector<32x128xf32>
    %cst_31 = arith.constant dense<0.000000e+00> : vector<32xf32>
    %51 = vector.multi_reduction <add>, %50, %cst_31 [1] : vector<32x128xf32> to vector<32xf32>
    %52 = vector.shape_cast %51 : vector<32xf32> to vector<32x1xf32>
    %cst_32 = arith.constant 1.280000e+02 : f32
    %53 = vector.broadcast %cst_32 : f32 to vector<32x1xf32>
    %54 = arith.divf %52, %53 : vector<32x1xf32>
    %cst_33 = arith.constant 9.99999974E-6 : f32
    %55 = vector.broadcast %cst_33 : f32 to vector<32x1xf32>
    %56 = arith.addf %54, %55 : vector<32x1xf32>
    %57 = math.rsqrt %56 : vector<32x1xf32>
    %58 = vector.broadcast %57 : vector<32x1xf32> to vector<32x128xf32>
    %59 = arith.mulf %49, %58 : vector<32x128xf32>
    %60 = vector.broadcast %42 : vector<1x128xf32> to vector<32x128xf32>
    %61 = arith.mulf %59, %60 : vector<32x128xf32>
    %62 = vector.broadcast %43 : vector<1x128xf32> to vector<32x128xf32>
    %63 = arith.addf %61, %62 : vector<32x128xf32>
    %c0_34 = arith.constant 0 : index
    %c0_35 = arith.constant 0 : index
    %64 = vector.load %arg12[%c0_34, %c0_35] : memref<32x128xf32, #tpu.memory_space<vmem>>, vector<32x128xf32>
    tpu.vector_store %arg12[%c0_34, %c0_35], %63 {strides = array<i32>} : memref<32x128xf32, #tpu.memory_space<vmem>>, vector<32x128xf32>,
    return
  }
  func.func @transform_0(%arg0: i32) -> (i32, i32) {
    %c0_i32 = arith.constant 0 : i32
    %c0_i32_0 = arith.constant 0 : i32
    return %arg0, %c0_i32 : i32, i32
  }
  func.func @transform_1(%arg0: i32) -> (i32, i32) {
    %c0_i32 = arith.constant 0 : i32
    %c0_i32_0 = arith.constant 0 : i32
    %c0_i32_1 = arith.constant 0 : i32
    return %c0_i32, %c0_i32_0 : i32, i32
  }
  func.func @transform_2(%arg0: i32) -> (i32, i32) {
    %c0_i32 = arith.constant 0 : i32
    %c0_i32_0 = arith.constant 0 : i32
    %c0_i32_1 = arith.constant 0 : i32
    return %c0_i32, %c0_i32_0 : i32, i32
  }
  func.func @transform_3(%arg0: i32) -> (i32, i32) {
    %c0_i32 = arith.constant 0 : i32
    %c0_i32_0 = arith.constant 0 : i32
    %c0_i32_1 = arith.constant 0 : i32
    return %c0_i32, %c0_i32_0 : i32, i32
  }
  func.func @transform_4(%arg0: i32) -> (i32, i32) {
    %c0_i32 = arith.constant 0 : i32
    %c0_i32_0 = arith.constant 0 : i32
    %c0_i32_1 = arith.constant 0 : i32
    return %c0_i32, %c0_i32_0 : i32, i32
  }
  func.func @transform_5(%arg0: i32) -> (i32, i32) {
    %c0_i32 = arith.constant 0 : i32
    %c0_i32_0 = arith.constant 0 : i32
    %c0_i32_1 = arith.constant 0 : i32
    return %c0_i32, %c0_i32_0 : i32, i32
  }
  func.func @transform_6(%arg0: i32) -> (i32, i32) {
    %c0_i32 = arith.constant 0 : i32
    %c0_i32_0 = arith.constant 0 : i32
    %c0_i32_1 = arith.constant 0 : i32
    return %c0_i32, %c0_i32_0 : i32, i32
  }
  func.func @transform_7(%arg0: i32) -> (i32, i32) {
    %c0_i32 = arith.constant 0 : i32
    %c0_i32_0 = arith.constant 0 : i32
    %c0_i32_1 = arith.constant 0 : i32
    return %c0_i32, %c0_i32_0 : i32, i32
  }
  func.func @transform_8(%arg0: i32) -> (i32, i32) {
    %c0_i32 = arith.constant 0 : i32
    %c0_i32_0 = arith.constant 0 : i32
    %c0_i32_1 = arith.constant 0 : i32
    return %c0_i32, %c0_i32_0 : i32, i32
  }
  func.func @transform_9(%arg0: i32) -> (i32, i32) {
    %c0_i32 = arith.constant 0 : i32
    %c0_i32_0 = arith.constant 0 : i32
    %c0_i32_1 = arith.constant 0 : i32
    return %c0_i32, %c0_i32_0 : i32, i32
  }
  func.func @transform_10(%arg0: i32) -> (i32, i32) {
    %c0_i32 = arith.constant 0 : i32
    %c0_i32_0 = arith.constant 0 : i32
    %c0_i32_1 = arith.constant 0 : i32
    return %c0_i32, %c0_i32_0 : i32, i32
  }
  func.func @transform_11(%arg0: i32) -> (i32, i32) {
    %c0_i32 = arith.constant 0 : i32
    %c0_i32_0 = arith.constant 0 : i32
    return %arg0, %c0_i32 : i32, i32
  }
}

</mosaic_0001>

<llo_original>
// kernel: self_attention_block.1
$region0: #{self_attention_block.1}
  #allocation0 [shape = 'u32[]', space=smem, size = 0x4, offset = 0x4, fixed_abs, tag = 'smem constant byte address 0x4 - core index']
  #allocation1 [shape = 'u32[144,128]{1,0:T(1,128)}', space=vmem, size = 0x12000, scoped, tag = 'internal scratch']
  %s0 = inlined_call_operand.hbm [shape: f32[32,128], index: 0, kind: input, shape index: {}]
  %s1 = inlined_call_operand.hbm [shape: f32[128,128], index: 1, kind: input, shape index: {}]
  %s2 = inlined_call_operand.vmem [shape: f32[1,128], index: 2, kind: input, shape index: {}]
  %s3 = inlined_call_operand.vmem [shape: f32[1,128], index: 3, kind: input, shape index: {}]
  %s4 = inlined_call_operand.vmem [shape: f32[1,128], index: 4, kind: input, shape index: {}]
  %s5 = inlined_call_operand.hbm [shape: f32[128,512], index: 5, kind: input, shape index: {}]
  %s6 = inlined_call_operand.vmem [shape: f32[1,512], index: 6, kind: input, shape index: {}]
  %s7 = inlined_call_operand.hbm [shape: f32[512,128], index: 7, kind: input, shape index: {}]
  %s8 = inlined_call_operand.vmem [shape: f32[1,128], index: 8, kind: input, shape index: {}]
  %s9 = inlined_call_operand.vmem [shape: f32[1,128], index: 9, kind: input, shape index: {}]
  %s10 = inlined_call_operand.hbm [shape: f32[1,128], index: 10, kind: input, shape index: {}]
  %s11 = inlined_call_operand.hbm [shape: f32[32,128], index: 11, kind: output, shape index: {}]
  %s12 = sld [smem:[#allocation0]]
  $region74: #{self_attention_block.1} parent=0
    _
  %s14 = ssub.s32 1, %s12
  %s15 = scalar_select 0, %s14, %s12
  $region1: #{self_attention_block.1} parent=0
    #allocation2 [shape = 'u8[16384]{0}', space=vmem, size = 0x4000, scoped, tag = 'input window, operand 0, single buffered']
    #allocation3 [shape = 's32[1]{0}', space=sflag, size = 0x4, scoped, tag = 'scoped memory for self_attention_block.1']
    #allocation4 [shape = 's32[1]{0}', space=sflag, size = 0x4, scoped, tag = 'scoped memory for self_attention_block.1']
    #allocation5 [shape = 'u8[65536]{0}', space=vmem, size = 0x10000, scoped, tag = 'input window, operand 1, single buffered']
    #allocation6 [shape = 's32[1]{0}', space=sflag, size = 0x4, scoped, tag = 'scoped memory for self_attention_block.1']
    #allocation7 [shape = 'u8[262144]{0}', space=vmem, size = 0x40000, scoped, tag = 'input window, operand 5, single buffered']
    #allocation8 [shape = 'u8[262144]{0}', space=vmem, size = 0x40000, scoped, tag = 'input window, operand 7, single buffered']
    #allocation9 [shape = 's32[1]{0}', space=sflag, size = 0x4, scoped, tag = 'scoped memory for self_attention_block.1']
    #allocation10 [shape = 'u8[512]{0}', space=vmem, size = 0x400, scoped, tag = 'input window, operand 10, single buffered']
    #allocation11 [shape = 'u8[16384]{0}', space=vmem, size = 0x4000, scoped, tag = 'output window, operand 0, single buffered']
    %16 = vsyncpa [#allocation3], 0
    %17 = vsyncpa [#allocation6], 0
    %18 = vsyncpa [#allocation9], 0
    %19 = vsyncpa [#allocation4], 0
    // Predicated region
    $region2: #{self_attention_block.1} parent=1 // pred_check
      _
    $region3: #{self_attention_block.1} parent=1 // pred_check_branch
      %21 = sbr.rel (0) target = $region5
    $region4: #{self_attention_block.1} parent=1 // pred_region
      %s23 = ssub.s32 512, 512
      %24 = vsyncadd [#allocation3], %s23
      %s25 = sshll.u32 [#allocation2], 4
      %s26 = int_to_ptr.vmem [resolvable:$true] %s25
      %31 = dma.hbm_to_vmem [thread:$0]  %s0, 512, %s26, [#allocation3], 128, 128, 8
    $region5: #{self_attention_block.1} parent=1 // pred_fallthru
      _
    // Predicated region
    $region6: #{self_attention_block.1} parent=1 // pred_check
      _
    $region7: #{self_attention_block.1} parent=1 // pred_check_branch
      %33 = sbr.rel (0) target = $region9
    $region8: #{self_attention_block.1} parent=1 // pred_region
      %s35 = ssub.s32 2048, 2048
      %36 = vsyncadd [#allocation6], %s35
      %s37 = sshll.u32 [#allocation5], 4
      %s38 = int_to_ptr.vmem [resolvable:$true] %s37
      %43 = dma.hbm_to_vmem [thread:$0]  %s1, 2048, %s38, [#allocation6], 128, 128, 8
    $region9: #{self_attention_block.1} parent=1 // pred_fallthru
      _
    // Predicated region
    $region10: #{self_attention_block.1} parent=1 // pred_check
      _
    $region11: #{self_attention_block.1} parent=1 // pred_check_branch
      %45 = sbr.rel (0) target = $region13
    $region12: #{self_attention_block.1} parent=1 // pred_region
      _
    $region13: #{self_attention_block.1} parent=1 // pred_fallthru
      _
    // Predicated region
    $region14: #{self_attention_block.1} parent=1 // pred_check
      _
    $region15: #{self_attention_block.1} parent=1 // pred_check_branch
      %47 = sbr.rel (0) target = $region17
    $region16: #{self_attention_block.1} parent=1 // pred_region
      _
    $region17: #{self_attention_block.1} parent=1 // pred_fallthru
      _
    // Predicated region
    $region18: #{self_attention_block.1} parent=1 // pred_check
      _
    $region19: #{self_attention_block.1} parent=1 // pred_check_branch
      %49 = sbr.rel (0) target = $region21
    $region20: #{self_attention_block.1} parent=1 // pred_region
      _
    $region21: #{self_attention_block.1} parent=1 // pred_fallthru
      _
    // Predicated region
    $region22: #{self_attention_block.1} parent=1 // pred_check
      _
    $region23: #{self_attention_block.1} parent=1 // pred_check_branch
      %51 = sbr.rel (0) target = $region25
    $region24: #{self_attention_block.1} parent=1 // pred_region
      %s53 = ssub.s32 8192, 8192
      %54 = vsyncadd [#allocation6], %s53
      %s55 = sshll.u32 [#allocation7], 4
      %s56 = int_to_ptr.vmem [resolvable:$true] %s55
      %61 = dma.hbm_to_vmem [thread:$0]  %s5, 8192, %s56, [#allocation6], 512, 512, 32
    $region25: #{self_attention_block.1} parent=1 // pred_fallthru
      _
    // Predicated region
    $region26: #{self_attention_block.1} parent=1 // pred_check
      _
    $region27: #{self_attention_block.1} parent=1 // pred_check_branch
      %63 = sbr.rel (0) target = $region29
    $region28: #{self_attention_block.1} parent=1 // pred_region
      _
    $region29: #{self_attention_block.1} parent=1 // pred_fallthru
      _
    // Predicated region
    $region30: #{self_attention_block.1} parent=1 // pred_check
      _
    $region31: #{self_attention_block.1} parent=1 // pred_check_branch
      %65 = sbr.rel (0) target = $region33
    $region32: #{self_attention_block.1} parent=1 // pred_region
      %s67 = ssub.s32 8192, 8192
      %68 = vsyncadd [#allocation9], %s67
      %s69 = sshll.u32 [#allocation8], 4
      %s70 = int_to_ptr.vmem [resolvable:$true] %s69
      %75 = dma.hbm_to_vmem [thread:$0]  %s7, 8192, %s70, [#allocation9], 128, 128, 8
    $region33: #{self_attention_block.1} parent=1 // pred_fallthru
      _
    // Predicated region
    $region34: #{self_attention_block.1} parent=1 // pred_check
      _
    $region35: #{self_attention_block.1} parent=1 // pred_check_branch
      %77 = sbr.rel (0) target = $region37
    $region36: #{self_attention_block.1} parent=1 // pred_region
      _
    $region37: #{self_attention_block.1} parent=1 // pred_fallthru
      _
    // Predicated region
    $region38: #{self_attention_block.1} parent=1 // pred_check
      _
    $region39: #{self_attention_block.1} parent=1 // pred_check_branch
      %79 = sbr.rel (0) target = $region41
    $region40: #{self_attention_block.1} parent=1 // pred_region
      _
    $region41: #{self_attention_block.1} parent=1 // pred_fallthru
      _
    // Predicated region
    $region42: #{self_attention_block.1} parent=1 // pred_check
      _
    $region43: #{self_attention_block.1} parent=1 // pred_check_branch
      %81 = sbr.rel (0) target = $region45
    $region44: #{self_attention_block.1} parent=1 // pred_region
      %s83 = ssub.s32 16, 16
      %84 = vsyncadd [#allocation9], %s83
      %s86 = sshll.u32 [#allocation10], 4
      %s87 = int_to_ptr.vmem [resolvable:$true] %s86
      %89 = dma.hbm_to_vmem [thread:$0]  %s10, 16, %s87, [#allocation9]
    $region45: #{self_attention_block.1} parent=1 // pred_fallthru
      _
    // Predicated region
    $region46: #{self_attention_block.1} parent=1 // pred_check
      _
    $region47: #{self_attention_block.1} parent=1 // pred_check_branch
      %91 = sbr.rel (0) target = $region49
    $region48: #{self_attention_block.1} parent=1 // pred_region
      %92 = dma.done [#allocation3], 512
    $region49: #{self_attention_block.1} parent=1 // pred_fallthru
      _
    // Predicated region
    $region50: #{self_attention_block.1} parent=1 // pred_check
      _
    $region51: #{self_attention_block.1} parent=1 // pred_check_branch
      %94 = sbr.rel (0) target = $region53
    $region52: #{self_attention_block.1} parent=1 // pred_region
      %95 = dma.done [#allocation6], 2048
    $region53: #{self_attention_block.1} parent=1 // pred_fallthru
      _
    // Predicated region
    $region54: #{self_attention_block.1} parent=1 // pred_check
      _
    $region55: #{self_attention_block.1} parent=1 // pred_check_branch
      %97 = sbr.rel (0) target = $region57
    $region56: #{self_attention_block.1} parent=1 // pred_region
      %98 = dma.done [#allocation6], 8192
    $region57: #{self_attention_block.1} parent=1 // pred_fallthru
      _
    // Predicated region
    $region58: #{self_attention_block.1} parent=1 // pred_check
      _
    $region59: #{self_attention_block.1} parent=1 // pred_check_branch
      %100 = sbr.rel (0) target = $region61
    $region60: #{self_attention_block.1} parent=1 // pred_region
      %101 = dma.done [#allocation9], 8192
    $region61: #{self_attention_block.1} parent=1 // pred_fallthru
      _
    // Predicated region
    $region62: #{self_attention_block.1} parent=1 // pred_check
      _
    $region63: #{self_attention_block.1} parent=1 // pred_check_branch
      %103 = sbr.rel (0) target = $region65
    $region64: #{self_attention_block.1} parent=1 // pred_region
      %104 = dma.done [#allocation9], 16
    $region65: #{self_attention_block.1} parent=1 // pred_fallthru
      _
    %v105 = vld [vmem:[#allocation2] sm:$0xff]
    %v106 = vld [vmem:[#allocation2 + $0x8] sm:$0xff]
    %v107 = vld [vmem:[#allocation2 + $0x10] sm:$0xff]
    %v108 = vld [vmem:[#allocation2 + $0x18] sm:$0xff]
    %v109 = vld [vmem:[#allocation5] sm:$0xff]
    %v110 = vld [vmem:[#allocation5 + $0x8] sm:$0xff]
    %v111 = vld [vmem:[#allocation5 + $0x10] sm:$0xff]
    %v112 = vld [vmem:[#allocation5 + $0x18] sm:$0xff]
    %v113 = vld [vmem:[#allocation5 + $0x20] sm:$0xff]
    %v114 = vld [vmem:[#allocation5 + $0x28] sm:$0xff]
    %v115 = vld [vmem:[#allocation5 + $0x30] sm:$0xff]
    %v116 = vld [vmem:[#allocation5 + $0x38] sm:$0xff]
    %v117 = vld [vmem:[#allocation5 + $0x40] sm:$0xff]
    %v118 = vld [vmem:[#allocation5 + $0x48] sm:$0xff]
    %v119 = vld [vmem:[#allocation5 + $0x50] sm:$0xff]
    %v120 = vld [vmem:[#allocation5 + $0x58] sm:$0xff]
    %v121 = vld [vmem:[#allocation5 + $0x60] sm:$0xff]
    %v122 = vld [vmem:[#allocation5 + $0x68] sm:$0xff]
    %v123 = vld [vmem:[#allocation5 + $0x70] sm:$0xff]
    %v124 = vld [vmem:[#allocation5 + $0x78] sm:$0xff]
    %v125 = vld [vmem:[%s2] sm:$0x1]
    %v127 = vlaneseq
    %v128 = vshrl.u32 %v127, 7
    %v129 = vsub.s32 0, %v128
    %v130 = vrot.slane %v125, %v129
    %132 = vmatprep.subr.mxu0 0.0
    %133 = vmatpush1.msra.mxu0 %v109
    %134 = vmatprep.subr.mxu0 0.0
    %135 = vmatpush1.msra.mxu0 %v110
    %136 = vmatprep.subr.mxu0 0.0
    %137 = vmatpush1.msra.mxu0 %v111
    %138 = vmatprep.subr.mxu0 0.0
    %139 = vmatpush1.msra.mxu0 %v112
    %140 = vmatprep.subr.mxu0 0.0
    %141 = vmatpush1.msra.mxu0 %v113
    %142 = vmatprep.subr.mxu0 0.0
    %143 = vmatpush1.msra.mxu0 %v114
    %144 = vmatprep.subr.mxu0 0.0
    %145 = vmatpush1.msra.mxu0 %v115
    %146 = vmatprep.subr.mxu0 0.0
    %147 = vmatpush1.msra.mxu0 %v116
    %148 = vmatprep.subr.mxu0 0.0
    %149 = vmatpush1.msra.mxu0 %v117
    %150 = vmatprep.subr.mxu0 0.0
    %151 = vmatpush1.msra.mxu0 %v118
    %152 = vmatprep.subr.mxu0 0.0
    %153 = vmatpush1.msra.mxu0 %v119
    %154 = vmatprep.subr.mxu0 0.0
    %155 = vmatpush1.msra.mxu0 %v120
    %156 = vmatprep.subr.mxu0 0.0
    %157 = vmatpush1.msra.mxu0 %v121
    %158 = vmatprep.subr.mxu0 0.0
    %159 = vmatpush1.msra.mxu0 %v122
    %160 = vmatprep.subr.mxu0 0.0
    %161 = vmatpush1.msra.mxu0 %v123
    %162 = vmatprep.subr.mxu0 0.0
    %163 = vmatpush1.msra.mxu0 %v124
    %164 = vmatprep.subr.mxu0 0.0
    %165 = vmatpush1.msra.mxu0 0.0
    %166 = vmatprep.subr.mxu0 0.0
    %167 = vmatpush1.msra.mxu0 0.0
    %168 = vmatprep.subr.mxu0 0.0
    %169 = vmatpush1.msra.mxu0 0.0
    %170 = vmatprep.subr.mxu0 0.0
    %171 = vmatpush1.msra.mxu0 0.0
    %172 = vmatprep.subr.mxu0 0.0
    %173 = vmatpush1.msra.mxu0 0.0
    %174 = vmatprep.subr.mxu0 0.0
    %175 = vmatpush1.msra.mxu0 0.0
    %176 = vmatprep.subr.mxu0 0.0
    %177 = vmatpush1.msra.mxu0 0.0
    %178 = vmatprep.subr.mxu0 0.0
    %179 = vmatpush1.msra.mxu0 0.0
    %180 = vmatprep.subr.mxu0 0.0
    %181 = vmatpush1.msra.mxu0 0.0
    %182 = vmatprep.subr.mxu0 0.0
    %183 = vmatpush1.msra.mxu0 0.0
    %184 = vmatprep.subr.mxu0 0.0
    %185 = vmatpush1.msra.mxu0 0.0
    %186 = vmatprep.subr.mxu0 0.0
    %187 = vmatpush1.msra.mxu0 0.0
    %188 = vmatprep.subr.mxu0 0.0
    %189 = vmatpush1.msra.mxu0 0.0
    %190 = vmatprep.subr.mxu0 0.0
    %191 = vmatpush1.msra.mxu0 0.0
    %192 = vmatprep.subr.mxu0 0.0
    %193 = vmatpush1.msra.mxu0 0.0
    %194 = vmatprep.subr.mxu0 0.0
    %195 = vmatpush1.msra.mxu0 0.0
    %196 = vmatprep.mubr.f32.mxu0 0.0
    %197 = vmatmul.mubr.f32.gmra.mrb[0].mxu0 %v105
    %v198 = vpop.f32.mrb[0].mxu0
    %v199 = vadd.f32 %v130, %v198
    %v200 = vpop.f32.mrb[0].mxu0
    %201 = vmatprep.mubr.f32.mxu0 0.0
    %202 = vmatmul.mubr.f32.gmra.mrb[0].mxu0 %v106
    %v203 = vpop.f32.mrb[0].mxu0
    %v204 = vadd.f32 %v130, %v203
    %v205 = vpop.f32.mrb[0].mxu0
    %206 = vmatprep.mubr.f32.mxu0 0.0
    %207 = vmatmul.mubr.f32.gmra.mrb[0].mxu0 %v107
    %v208 = vpop.f32.mrb[0].mxu0
    %v209 = vadd.f32 %v130, %v208
    %v210 = vpop.f32.mrb[0].mxu0
    %211 = vmatprep.mubr.f32.mxu0 0.0
    %212 = vmatmul.mubr.f32.gmra.mrb[0].mxu0 %v108
    %v213 = vpop.f32.mrb[0].mxu0
    %v214 = vadd.f32 %v130, %v213
    %v215 = vpop.f32.mrb[0].mxu0
    %216 = vdwg.mxu0
    %v217 = vadd.f32 %v105, %v199
    %v218 = vadd.f32 %v106, %v204
    %v219 = vadd.f32 %v107, %v209
    %v220 = vadd.f32 %v108, %v214
    %v221 = vld [vmem:[%s3] sm:$0x1]
    %v222 = vld [vmem:[%s4] sm:$0x1]
    %223 = vadd.xlane.f32.xlu0 %v217
    %v224 = vpop.xlane.xlu0 %223
    %225 = vadd.xlane.f32.xlu0 %v218
    %v226 = vpop.xlane.xlu0 %225
    %227 = vadd.xlane.f32.xlu0 %v219
    %v228 = vpop.xlane.xlu0 %227
    %229 = vadd.xlane.f32.xlu0 %v220
    %v230 = vpop.xlane.xlu0 %229
    %v231 = vrcp.pop 128.0
    %v232 = vmul.f32 %v224, %v231
    %v233 = vmul.f32 %v226, %v231
    %v234 = vmul.f32 %v228, %v231
    %v235 = vmul.f32 %v230, %v231
    %v236 = vsub.f32 %v217, %v232
    %v237 = vsub.f32 %v218, %v233
    %v238 = vsub.f32 %v219, %v234
    %v239 = vsub.f32 %v220, %v235
    %v240 = vmul.f32 %v236, %v236
    %v241 = vmul.f32 %v237, %v237
    %v242 = vmul.f32 %v238, %v238
    %v243 = vmul.f32 %v239, %v239
    %244 = vadd.xlane.f32.xlu0 %v240
    %v245 = vpop.xlane.xlu0 %244
    %246 = vadd.xlane.f32.xlu0 %v241
    %v247 = vpop.xlane.xlu0 %246
    %248 = vadd.xlane.f32.xlu0 %v242
    %v249 = vpop.xlane.xlu0 %248
    %250 = vadd.xlane.f32.xlu0 %v243
    %v251 = vpop.xlane.xlu0 %250
    %v252 = vmul.f32 %v245, %v231
    %v253 = vmul.f32 %v247, %v231
    %v254 = vmul.f32 %v249, %v231
    %v255 = vmul.f32 %v251, %v231
    %v256 = vadd.f32 %v252, 1e-05
    %v257 = vadd.f32 %v253, 1e-05
    %v258 = vadd.f32 %v254, 1e-05
    %v259 = vadd.f32 %v255, 1e-05
    %v260 = vrsqrt.pop %v256
    %v261 = vrsqrt.pop %v257
    %v262 = vrsqrt.pop %v258
    %v263 = vrsqrt.pop %v259
    %v264 = vmul.f32 %v236, %v260
    %v265 = vmul.f32 %v237, %v261
    %v266 = vmul.f32 %v238, %v262
    %v267 = vmul.f32 %v239, %v263
    %v269 = vlaneseq
    %v270 = vshrl.u32 %v269, 7
    %v271 = vsub.s32 0, %v270
    %v272 = vrot.slane %v221, %v271
    %v274 = vmul.f32 %v264, %v272
    %v275 = vmul.f32 %v265, %v272
    %v276 = vmul.f32 %v266, %v272
    %v277 = vmul.f32 %v267, %v272
    %v279 = vlaneseq
    %v280 = vshrl.u32 %v279, 7
    %v281 = vsub.s32 0, %v280
    %v282 = vrot.slane %v222, %v281
    %v284 = vadd.f32 %v274, %v282
    %v285 = vadd.f32 %v275, %v282
    %v286 = vadd.f32 %v276, %v282
    %v287 = vadd.f32 %v277, %v282
    %v288 = vld [vmem:[#allocation7] sm:$0xff]
    %v289 = vld [vmem:[#allocation7 + $0x8] sm:$0xff]
    %v290 = vld [vmem:[#allocation7 + $0x10] sm:$0xff]
    %v291 = vld [vmem:[#allocation7 + $0x18] sm:$0xff]
    %v292 = vld [vmem:[#allocation7 + $0x20] sm:$0xff]
    %v293 = vld [vmem:[#allocation7 + $0x28] sm:$0xff]
    %v294 = vld [vmem:[#allocation7 + $0x30] sm:$0xff]
    %v295 = vld [vmem:[#allocation7 + $0x38] sm:$0xff]
    %v296 = vld [vmem:[#allocation7 + $0x40] sm:$0xff]
    %v297 = vld [vmem:[#allocation7 + $0x48] sm:$0xff]
    %v298 = vld [vmem:[#allocation7 + $0x50] sm:$0xff]
    %v299 = vld [vmem:[#allocation7 + $0x58] sm:$0xff]
    %v300 = vld [vmem:[#allocation7 + $0x60] sm:$0xff]
    %v301 = vld [vmem:[#allocation7 + $0x68] sm:$0xff]
    %v302 = vld [vmem:[#allocation7 + $0x70] sm:$0xff]
    %v303 = vld [vmem:[#allocation7 + $0x78] sm:$0xff]
    %v304 = vld [vmem:[#allocation7 + $0x80] sm:$0xff]
    %v305 = vld [vmem:[#allocation7 + $0x88] sm:$0xff]
    %v306 = vld [vmem:[#allocation7 + $0x90] sm:$0xff]
    %v307 = vld [vmem:[#allocation7 + $0x98] sm:$0xff]
    %v308 = vld [vmem:[#allocation7 + $0xa0] sm:$0xff]
    %v309 = vld [vmem:[#allocation7 + $0xa8] sm:$0xff]
    %v310 = vld [vmem:[#allocation7 + $0xb0] sm:$0xff]
    %v311 = vld [vmem:[#allocation7 + $0xb8] sm:$0xff]
    %v312 = vld [vmem:[#allocation7 + $0xc0] sm:$0xff]
    %v313 = vld [vmem:[#allocation7 + $0xc8] sm:$0xff]
    %v314 = vld [vmem:[#allocation7 + $0xd0] sm:$0xff]
    %v315 = vld [vmem:[#allocation7 + $0xd8] sm:$0xff]
    %v316 = vld [vmem:[#allocation7 + $0xe0] sm:$0xff]
    %v317 = vld [vmem:[#allocation7 + $0xe8] sm:$0xff]
    %v318 = vld [vmem:[#allocation7 + $0xf0] sm:$0xff]
    %v319 = vld [vmem:[#allocation7 + $0xf8] sm:$0xff]
    %v320 = vld [vmem:[#allocation7 + $0x100] sm:$0xff]
    %v321 = vld [vmem:[#allocation7 + $0x108] sm:$0xff]
    %v322 = vld [vmem:[#allocation7 + $0x110] sm:$0xff]
    %v323 = vld [vmem:[#allocation7 + $0x118] sm:$0xff]
    %v324 = vld [vmem:[#allocation7 + $0x120] sm:$0xff]
    %v325 = vld [vmem:[#allocation7 + $0x128] sm:$0xff]
    %v326 = vld [vmem:[#allocation7 + $0x130] sm:$0xff]
    %v327 = vld [vmem:[#allocation7 + $0x138] sm:$0xff]
    %v328 = vld [vmem:[#allocation7 + $0x140] sm:$0xff]
    %v329 = vld [vmem:[#allocation7 + $0x148] sm:$0xff]
    %v330 = vld [vmem:[#allocation7 + $0x150] sm:$0xff]
    %v331 = vld [vmem:[#allocation7 + $0x158] sm:$0xff]
    %v332 = vld [vmem:[#allocation7 + $0x160] sm:$0xff]
    %v333 = vld [vmem:[#allocation7 + $0x168] sm:$0xff]
    %v334 = vld [vmem:[#allocation7 + $0x170] sm:$0xff]
    %v335 = vld [vmem:[#allocation7 + $0x178] sm:$0xff]
    %v336 = vld [vmem:[#allocation7 + $0x180] sm:$0xff]
    %v337 = vld [vmem:[#allocation7 + $0x188] sm:$0xff]
    %v338 = vld [vmem:[#allocation7 + $0x190] sm:$0xff]
    %v339 = vld [vmem:[#allocation7 + $0x198] sm:$0xff]
    %v340 = vld [vmem:[#allocation7 + $0x1a0] sm:$0xff]
    %v341 = vld [vmem:[#allocation7 + $0x1a8] sm:$0xff]
    %v342 = vld [vmem:[#allocation7 + $0x1b0] sm:$0xff]
    %v343 = vld [vmem:[#allocation7 + $0x1b8] sm:$0xff]
    %v344 = vld [vmem:[#allocation7 + $0x1c0] sm:$0xff]
    %v345 = vld [vmem:[#allocation7 + $0x1c8] sm:$0xff]
    %v346 = vld [vmem:[#allocation7 + $0x1d0] sm:$0xff]
    %v347 = vld [vmem:[#allocation7 + $0x1d8] sm:$0xff]
    %v348 = vld [vmem:[#allocation7 + $0x1e0] sm:$0xff]
    %v349 = vld [vmem:[#allocation7 + $0x1e8] sm:$0xff]
    %v350 = vld [vmem:[#allocation7 + $0x1f0] sm:$0xff]
    %v351 = vld [vmem:[#allocation7 + $0x1f8] sm:$0xff]
    %v352 = vld [vmem:[%s6] sm:$0xf]
    %v354 = vlaneseq
    %v355 = vshrl.u32 %v354, 7
    %v356 = vsub.s32 0, %v355
    %v357 = vrot.slane %v352, %v356
    %v358 = vlaneseq
    %v359 = vshrl.u32 %v358, 7
    %v360 = vsub.s32 1, %v359
    %v361 = vrot.slane %v352, %v360
    %v362 = vlaneseq
    %v363 = vshrl.u32 %v362, 7
    %v364 = vsub.s32 2, %v363
    %v365 = vrot.slane %v352, %v364
    %v366 = vlaneseq
    %v367 = vshrl.u32 %v366, 7
    %v368 = vsub.s32 3, %v367
    %v369 = vrot.slane %v352, %v368
    %374 = vmatprep.subr.mxu0 %v289
    %375 = vmatpush1.msra.mxu0 %v288
    %376 = vmatprep.subr.mxu0 %v293
    %377 = vmatpush1.msra.mxu0 %v292
    %378 = vmatprep.subr.mxu0 %v297
    %379 = vmatpush1.msra.mxu0 %v296
    %380 = vmatprep.subr.mxu0 %v301
    %381 = vmatpush1.msra.mxu0 %v300
    %382 = vmatprep.subr.mxu0 %v305
    %383 = vmatpush1.msra.mxu0 %v304
    %384 = vmatprep.subr.mxu0 %v309
    %385 = vmatpush1.msra.mxu0 %v308
    %386 = vmatprep.subr.mxu0 %v313
    %387 = vmatpush1.msra.mxu0 %v312
    %388 = vmatprep.subr.mxu0 %v317
    %389 = vmatpush1.msra.mxu0 %v316
    %390 = vmatprep.subr.mxu0 %v321
    %391 = vmatpush1.msra.mxu0 %v320
    %392 = vmatprep.subr.mxu0 %v325
    %393 = vmatpush1.msra.mxu0 %v324
    %394 = vmatprep.subr.mxu0 %v329
    %395 = vmatpush1.msra.mxu0 %v328
    %396 = vmatprep.subr.mxu0 %v333
    %397 = vmatpush1.msra.mxu0 %v332
    %398 = vmatprep.subr.mxu0 %v337
    %399 = vmatpush1.msra.mxu0 %v336
    %400 = vmatprep.subr.mxu0 %v341
    %401 = vmatpush1.msra.mxu0 %v340
    %402 = vmatprep.subr.mxu0 %v345
    %403 = vmatpush1.msra.mxu0 %v344
    %404 = vmatprep.subr.mxu0 %v349
    %405 = vmatpush1.msra.mxu0 %v348
    %406 = vmatprep.subr.mxu0 0.0
    %407 = vmatpush1.msra.mxu0 0.0
    %408 = vmatprep.subr.mxu0 0.0
    %409 = vmatpush1.msra.mxu0 0.0
    %410 = vmatprep.subr.mxu0 0.0
    %411 = vmatpush1.msra.mxu0 0.0
    %412 = vmatprep.subr.mxu0 0.0
    %413 = vmatpush1.msra.mxu0 0.0
    %414 = vmatprep.subr.mxu0 0.0
    %415 = vmatpush1.msra.mxu0 0.0
    %416 = vmatprep.subr.mxu0 0.0
    %417 = vmatpush1.msra.mxu0 0.0
    %418 = vmatprep.subr.mxu0 0.0
    %419 = vmatpush1.msra.mxu0 0.0
    %420 = vmatprep.subr.mxu0 0.0
    %421 = vmatpush1.msra.mxu0 0.0
    %422 = vmatprep.subr.mxu0 0.0
    %423 = vmatpush1.msra.mxu0 0.0
    %424 = vmatprep.subr.mxu0 0.0
    %425 = vmatpush1.msra.mxu0 0.0
    %426 = vmatprep.subr.mxu0 0.0
    %427 = vmatpush1.msra.mxu0 0.0
    %428 = vmatprep.subr.mxu0 0.0
    %429 = vmatpush1.msra.mxu0 0.0
    %430 = vmatprep.subr.mxu0 0.0
    %431 = vmatpush1.msra.mxu0 0.0
    %432 = vmatprep.subr.mxu0 0.0
    %433 = vmatpush1.msra.mxu0 0.0
    %434 = vmatprep.subr.mxu0 0.0
    %435 = vmatpush1.msra.mxu0 0.0
    %436 = vmatprep.subr.mxu0 0.0
    %437 = vmatpush1.msra.mxu0 0.0
    %438 = vmatprep.mubr.f32.mxu0 0.0
    %439 = vmatmul.mubr.f32.gmra.mrb[0].mxu0 %v284
    %v440 = vpop.f32.mrb[0].mxu0
    %v441 = vadd.f32 %v357, %v440
    %v442 = vpop.f32.mrb[0].mxu0
    %v443 = vadd.f32 %v361, %v442
    %444 = vmatprep.mubr.f32.mxu0 0.0
    %445 = vmatmul.mubr.f32.gmra.mrb[0].mxu0 %v285
    %v446 = vpop.f32.mrb[0].mxu0
    %v447 = vadd.f32 %v357, %v446
    %v448 = vpop.f32.mrb[0].mxu0
    %v449 = vadd.f32 %v361, %v448
    %450 = vmatprep.mubr.f32.mxu0 0.0
    %451 = vmatmul.mubr.f32.gmra.mrb[0].mxu0 %v286
    %v452 = vpop.f32.mrb[0].mxu0
    %v453 = vadd.f32 %v357, %v452
    %v454 = vpop.f32.mrb[0].mxu0
    %v455 = vadd.f32 %v361, %v454
    %456 = vmatprep.mubr.f32.mxu0 0.0
    %457 = vmatmul.mubr.f32.gmra.mrb[0].mxu0 %v287
    %v458 = vpop.f32.mrb[0].mxu0
    %v459 = vadd.f32 %v357, %v458
    %v460 = vpop.f32.mrb[0].mxu0
    %v461 = vadd.f32 %v361, %v460
    %462 = vdwg.mxu0
    %463 = vmatprep.subr.mxu0 %v291
    %464 = vmatpush1.msra.mxu0 %v290
    %465 = vmatprep.subr.mxu0 %v295
    %466 = vmatpush1.msra.mxu0 %v294
    %467 = vmatprep.subr.mxu0 %v299
    %468 = vmatpush1.msra.mxu0 %v298
    %469 = vmatprep.subr.mxu0 %v303
    %470 = vmatpush1.msra.mxu0 %v302
    %471 = vmatprep.subr.mxu0 %v307
    %472 = vmatpush1.msra.mxu0 %v306
    %473 = vmatprep.subr.mxu0 %v311
    %474 = vmatpush1.msra.mxu0 %v310
    %475 = vmatprep.subr.mxu0 %v315
    %476 = vmatpush1.msra.mxu0 %v314
    %477 = vmatprep.subr.mxu0 %v319
    %478 = vmatpush1.msra.mxu0 %v318
    %479 = vmatprep.subr.mxu0 %v323
    %480 = vmatpush1.msra.mxu0 %v322
    %481 = vmatprep.subr.mxu0 %v327
    %482 = vmatpush1.msra.mxu0 %v326
    %483 = vmatprep.subr.mxu0 %v331
    %484 = vmatpush1.msra.mxu0 %v330
    %485 = vmatprep.subr.mxu0 %v335
    %486 = vmatpush1.msra.mxu0 %v334
    %487 = vmatprep.subr.mxu0 %v339
    %488 = vmatpush1.msra.mxu0 %v338
    %489 = vmatprep.subr.mxu0 %v343
    %490 = vmatpush1.msra.mxu0 %v342
    %491 = vmatprep.subr.mxu0 %v347
    %492 = vmatpush1.msra.mxu0 %v346
    %493 = vmatprep.subr.mxu0 %v351
    %494 = vmatpush1.msra.mxu0 %v350
    %495 = vmatprep.subr.mxu0 0.0
    %496 = vmatpush1.msra.mxu0 0.0
    %497 = vmatprep.subr.mxu0 0.0
    %498 = vmatpush1.msra.mxu0 0.0
    %499 = vmatprep.subr.mxu0 0.0
    %500 = vmatpush1.msra.mxu0 0.0
    %501 = vmatprep.subr.mxu0 0.0
    %502 = vmatpush1.msra.mxu0 0.0
    %503 = vmatprep.subr.mxu0 0.0
    %504 = vmatpush1.msra.mxu0 0.0
    %505 = vmatprep.subr.mxu0 0.0
    %506 = vmatpush1.msra.mxu0 0.0
    %507 = vmatprep.subr.mxu0 0.0
    %508 = vmatpush1.msra.mxu0 0.0
    %509 = vmatprep.subr.mxu0 0.0
    %510 = vmatpush1.msra.mxu0 0.0
    %511 = vmatprep.subr.mxu0 0.0
    %512 = vmatpush1.msra.mxu0 0.0
    %513 = vmatprep.subr.mxu0 0.0
    %514 = vmatpush1.msra.mxu0 0.0
    %515 = vmatprep.subr.mxu0 0.0
    %516 = vmatpush1.msra.mxu0 0.0
    %517 = vmatprep.subr.mxu0 0.0
    %518 = vmatpush1.msra.mxu0 0.0
    %519 = vmatprep.subr.mxu0 0.0
    %520 = vmatpush1.msra.mxu0 0.0
    %521 = vmatprep.subr.mxu0 0.0
    %522 = vmatpush1.msra.mxu0 0.0
    %523 = vmatprep.subr.mxu0 0.0
    %524 = vmatpush1.msra.mxu0 0.0
    %525 = vmatprep.subr.mxu0 0.0
    %526 = vmatpush1.msra.mxu0 0.0
    %527 = vmatprep.mubr.f32.mxu0 0.0
    %528 = vmatmul.mubr.f32.gmra.mrb[0].mxu0 %v284
    %v529 = vpop.f32.mrb[0].mxu0
    %v530 = vadd.f32 %v365, %v529
    %v531 = vpop.f32.mrb[0].mxu0
    %v532 = vadd.f32 %v369, %v531
    %533 = vmatprep.mubr.f32.mxu0 0.0
    %534 = vmatmul.mubr.f32.gmra.mrb[0].mxu0 %v285
    %v535 = vpop.f32.mrb[0].mxu0
    %v536 = vadd.f32 %v365, %v535
    %v537 = vpop.f32.mrb[0].mxu0
    %v538 = vadd.f32 %v369, %v537
    %539 = vmatprep.mubr.f32.mxu0 0.0
    %540 = vmatmul.mubr.f32.gmra.mrb[0].mxu0 %v286
    %v541 = vpop.f32.mrb[0].mxu0
    %v542 = vadd.f32 %v365, %v541
    %v543 = vpop.f32.mrb[0].mxu0
    %v544 = vadd.f32 %v369, %v543
    %545 = vmatprep.mubr.f32.mxu0 0.0
    %546 = vmatmul.mubr.f32.gmra.mrb[0].mxu0 %v287
    %v547 = vpop.f32.mrb[0].mxu0
    %v548 = vadd.f32 %v365, %v547
    %v549 = vpop.f32.mrb[0].mxu0
    %v550 = vadd.f32 %v369, %v549
    %551 = vdwg.mxu0
    %v552 = vmax.f32 %v441, 0.0
    %v553 = vmax.f32 %v443, 0.0
    %v554 = vmax.f32 %v530, 0.0
    %v555 = vmax.f32 %v532, 0.0
    %v556 = vmax.f32 %v447, 0.0
    %v557 = vmax.f32 %v449, 0.0
    %v558 = vmax.f32 %v536, 0.0
    %v559 = vmax.f32 %v538, 0.0
    %v560 = vmax.f32 %v453, 0.0
    %v561 = vmax.f32 %v455, 0.0
    %v562 = vmax.f32 %v542, 0.0
    %v563 = vmax.f32 %v544, 0.0
    %v564 = vmax.f32 %v459, 0.0
    %v565 = vmax.f32 %v461, 0.0
    %v566 = vmax.f32 %v548, 0.0
    %v567 = vmax.f32 %v550, 0.0
    %v568 = vld [vmem:[#allocation8] sm:$0xff]
    %v569 = vld [vmem:[#allocation8 + $0x8] sm:$0xff]
    %v570 = vld [vmem:[#allocation8 + $0x10] sm:$0xff]
    %v571 = vld [vmem:[#allocation8 + $0x18] sm:$0xff]
    %v572 = vld [vmem:[#allocation8 + $0x20] sm:$0xff]
    %v573 = vld [vmem:[#allocation8 + $0x28] sm:$0xff]
    %v574 = vld [vmem:[#allocation8 + $0x30] sm:$0xff]
    %v575 = vld [vmem:[#allocation8 + $0x38] sm:$0xff]
    %v576 = vld [vmem:[#allocation8 + $0x40] sm:$0xff]
    %v577 = vld [vmem:[#allocation8 + $0x48] sm:$0xff]
    %v578 = vld [vmem:[#allocation8 + $0x50] sm:$0xff]
    %v579 = vld [vmem:[#allocation8 + $0x58] sm:$0xff]
    %v580 = vld [vmem:[#allocation8 + $0x60] sm:$0xff]
    %v581 = vld [vmem:[#allocation8 + $0x68] sm:$0xff]
    %v582 = vld [vmem:[#allocation8 + $0x70] sm:$0xff]
    %v583 = vld [vmem:[#allocation8 + $0x78] sm:$0xff]
    %v584 = vld [vmem:[#allocation8 + $0x80] sm:$0xff]
    %v585 = vld [vmem:[#allocation8 + $0x88] sm:$0xff]
    %v586 = vld [vmem:[#allocation8 + $0x90] sm:$0xff]
    %v587 = vld [vmem:[#allocation8 + $0x98] sm:$0xff]
    %v588 = vld [vmem:[#allocation8 + $0xa0] sm:$0xff]
    %v589 = vld [vmem:[#allocation8 + $0xa8] sm:$0xff]
    %v590 = vld [vmem:[#allocation8 + $0xb0] sm:$0xff]
    %v591 = vld [vmem:[#allocation8 + $0xb8] sm:$0xff]
    %v592 = vld [vmem:[#allocation8 + $0xc0] sm:$0xff]
    %v593 = vld [vmem:[#allocation8 + $0xc8] sm:$0xff]
    %v594 = vld [vmem:[#allocation8 + $0xd0] sm:$0xff]
    %v595 = vld [vmem:[#allocation8 + $0xd8] sm:$0xff]
    %v596 = vld [vmem:[#allocation8 + $0xe0] sm:$0xff]
    %v597 = vld [vmem:[#allocation8 + $0xe8] sm:$0xff]
    %v598 = vld [vmem:[#allocation8 + $0xf0] sm:$0xff]
    %v599 = vld [vmem:[#allocation8 + $0xf8] sm:$0xff]
    %v600 = vld [vmem:[#allocation8 + $0x100] sm:$0xff]
    %v601 = vld [vmem:[#allocation8 + $0x108] sm:$0xff]
    %v602 = vld [vmem:[#allocation8 + $0x110] sm:$0xff]
    %v603 = vld [vmem:[#allocation8 + $0x118] sm:$0xff]
    %v604 = vld [vmem:[#allocation8 + $0x120] sm:$0xff]
    %v605 = vld [vmem:[#allocation8 + $0x128] sm:$0xff]
    %v606 = vld [vmem:[#allocation8 + $0x130] sm:$0xff]
    %v607 = vld [vmem:[#allocation8 + $0x138] sm:$0xff]
    %v608 = vld [vmem:[#allocation8 + $0x140] sm:$0xff]
    %v609 = vld [vmem:[#allocation8 + $0x148] sm:$0xff]
    %v610 = vld [vmem:[#allocation8 + $0x150] sm:$0xff]
    %v611 = vld [vmem:[#allocation8 + $0x158] sm:$0xff]
    %v612 = vld [vmem:[#allocation8 + $0x160] sm:$0xff]
    %v613 = vld [vmem:[#allocation8 + $0x168] sm:$0xff]
    %v614 = vld [vmem:[#allocation8 + $0x170] sm:$0xff]
    %v615 = vld [vmem:[#allocation8 + $0x178] sm:$0xff]
    %v616 = vld [vmem:[#allocation8 + $0x180] sm:$0xff]
    %v617 = vld [vmem:[#allocation8 + $0x188] sm:$0xff]
    %v618 = vld [vmem:[#allocation8 + $0x190] sm:$0xff]
    %v619 = vld [vmem:[#allocation8 + $0x198] sm:$0xff]
    %v620 = vld [vmem:[#allocation8 + $0x1a0] sm:$0xff]
    %v621 = vld [vmem:[#allocation8 + $0x1a8] sm:$0xff]
    %v622 = vld [vmem:[#allocation8 + $0x1b0] sm:$0xff]
    %v623 = vld [vmem:[#allocation8 + $0x1b8] sm:$0xff]
    %v624 = vld [vmem:[#allocation8 + $0x1c0] sm:$0xff]
    %v625 = vld [vmem:[#allocation8 + $0x1c8] sm:$0xff]
    %v626 = vld [vmem:[#allocation8 + $0x1d0] sm:$0xff]
    %v627 = vld [vmem:[#allocation8 + $0x1d8] sm:$0xff]
    %v628 = vld [vmem:[#allocation8 + $0x1e0] sm:$0xff]
    %v629 = vld [vmem:[#allocation8 + $0x1e8] sm:$0xff]
    %v630 = vld [vmem:[#allocation8 + $0x1f0] sm:$0xff]
    %v631 = vld [vmem:[#allocation8 + $0x1f8] sm:$0xff]
    %v632 = vld [vmem:[%s8] sm:$0x1]
    %v634 = vlaneseq
    %v635 = vshrl.u32 %v634, 7
    %v636 = vsub.s32 0, %v635
    %v637 = vrot.slane %v632, %v636
    %639 = vmatprep.subr.mxu0 0.0
    %640 = vmatpush1.msra.mxu0 %v568
    %641 = vmatprep.subr.mxu0 0.0
    %642 = vmatpush1.msra.mxu0 %v569
    %643 = vmatprep.subr.mxu0 0.0
    %644 = vmatpush1.msra.mxu0 %v570
    %645 = vmatprep.subr.mxu0 0.0
    %646 = vmatpush1.msra.mxu0 %v571
    %647 = vmatprep.subr.mxu0 0.0
    %648 = vmatpush1.msra.mxu0 %v572
    %649 = vmatprep.subr.mxu0 0.0
    %650 = vmatpush1.msra.mxu0 %v573
    %651 = vmatprep.subr.mxu0 0.0
    %652 = vmatpush1.msra.mxu0 %v574
    %653 = vmatprep.subr.mxu0 0.0
    %654 = vmatpush1.msra.mxu0 %v575
    %655 = vmatprep.subr.mxu0 0.0
    %656 = vmatpush1.msra.mxu0 %v576
    %657 = vmatprep.subr.mxu0 0.0
    %658 = vmatpush1.msra.mxu0 %v577
    %659 = vmatprep.subr.mxu0 0.0
    %660 = vmatpush1.msra.mxu0 %v578
    %661 = vmatprep.subr.mxu0 0.0
    %662 = vmatpush1.msra.mxu0 %v579
    %663 = vmatprep.subr.mxu0 0.0
    %664 = vmatpush1.msra.mxu0 %v580
    %665 = vmatprep.subr.mxu0 0.0
    %666 = vmatpush1.msra.mxu0 %v581
    %667 = vmatprep.subr.mxu0 0.0
    %668 = vmatpush1.msra.mxu0 %v582
    %669 = vmatprep.subr.mxu0 0.0
    %670 = vmatpush1.msra.mxu0 %v583
    %671 = vmatprep.subr.mxu0 0.0
    %672 = vmatpush1.msra.mxu0 %v584
    %673 = vmatprep.subr.mxu0 0.0
    %674 = vmatpush1.msra.mxu0 %v585
    %675 = vmatprep.subr.mxu0 0.0
    %676 = vmatpush1.msra.mxu0 %v586
    %677 = vmatprep.subr.mxu0 0.0
    %678 = vmatpush1.msra.mxu0 %v587
    %679 = vmatprep.subr.mxu0 0.0
    %680 = vmatpush1.msra.mxu0 %v588
    %681 = vmatprep.subr.mxu0 0.0
    %682 = vmatpush1.msra.mxu0 %v589
    %683 = vmatprep.subr.mxu0 0.0
    %684 = vmatpush1.msra.mxu0 %v590
    %685 = vmatprep.subr.mxu0 0.0
    %686 = vmatpush1.msra.mxu0 %v591
    %687 = vmatprep.subr.mxu0 0.0
    %688 = vmatpush1.msra.mxu0 %v592
    %689 = vmatprep.subr.mxu0 0.0
    %690 = vmatpush1.msra.mxu0 %v593
    %691 = vmatprep.subr.mxu0 0.0
    %692 = vmatpush1.msra.mxu0 %v594
    %693 = vmatprep.subr.mxu0 0.0
    %694 = vmatpush1.msra.mxu0 %v595
    %695 = vmatprep.subr.mxu0 0.0
    %696 = vmatpush1.msra.mxu0 %v596
    %697 = vmatprep.subr.mxu0 0.0
    %698 = vmatpush1.msra.mxu0 %v597
    %699 = vmatprep.subr.mxu0 0.0
    %700 = vmatpush1.msra.mxu0 %v598
    %701 = vmatprep.subr.mxu0 0.0
    %702 = vmatpush1.msra.mxu0 %v599
    %703 = vmatprep.mubr.f32.mxu0 %v553
    %704 = vmatmul.mubr.f32.gmra.mrb[0].mxu0 %v552
    %v705 = vpop.f32.mrb[0].mxu0
    %v706 = vadd.f32 %v637, %v705
    %v707 = vpop.f32.mrb[0].mxu0
    %708 = vmatprep.mubr.f32.mxu0 %v557
    %709 = vmatmul.mubr.f32.gmra.mrb[0].mxu0 %v556
    %v710 = vpop.f32.mrb[0].mxu0
    %v711 = vadd.f32 %v637, %v710
    %v712 = vpop.f32.mrb[0].mxu0
    %713 = vmatprep.mubr.f32.mxu0 %v561
    %714 = vmatmul.mubr.f32.gmra.mrb[0].mxu0 %v560
    %v715 = vpop.f32.mrb[0].mxu0
    %v716 = vadd.f32 %v637, %v715
    %v717 = vpop.f32.mrb[0].mxu0
    %718 = vmatprep.mubr.f32.mxu0 %v565
    %719 = vmatmul.mubr.f32.gmra.mrb[0].mxu0 %v564
    %v720 = vpop.f32.mrb[0].mxu0
    %v721 = vadd.f32 %v637, %v720
    %v722 = vpop.f32.mrb[0].mxu0
    %723 = vdwg.mxu0
    %724 = vmatprep.subr.mxu0 0.0
    %725 = vmatpush1.msra.mxu0 %v600
    %726 = vmatprep.subr.mxu0 0.0
    %727 = vmatpush1.msra.mxu0 %v601
    %728 = vmatprep.subr.mxu0 0.0
    %729 = vmatpush1.msra.mxu0 %v602
    %730 = vmatprep.subr.mxu0 0.0
    %731 = vmatpush1.msra.mxu0 %v603
    %732 = vmatprep.subr.mxu0 0.0
    %733 = vmatpush1.msra.mxu0 %v604
    %734 = vmatprep.subr.mxu0 0.0
    %735 = vmatpush1.msra.mxu0 %v605
    %736 = vmatprep.subr.mxu0 0.0
    %737 = vmatpush1.msra.mxu0 %v606
    %738 = vmatprep.subr.mxu0 0.0
    %739 = vmatpush1.msra.mxu0 %v607
    %740 = vmatprep.subr.mxu0 0.0
    %741 = vmatpush1.msra.mxu0 %v608
    %742 = vmatprep.subr.mxu0 0.0
    %743 = vmatpush1.msra.mxu0 %v609
    %744 = vmatprep.subr.mxu0 0.0
    %745 = vmatpush1.msra.mxu0 %v610
    %746 = vmatprep.subr.mxu0 0.0
    %747 = vmatpush1.msra.mxu0 %v611
    %748 = vmatprep.subr.mxu0 0.0
    %749 = vmatpush1.msra.mxu0 %v612
    %750 = vmatprep.subr.mxu0 0.0
    %751 = vmatpush1.msra.mxu0 %v613
    %752 = vmatprep.subr.mxu0 0.0
    %753 = vmatpush1.msra.mxu0 %v614
    %754 = vmatprep.subr.mxu0 0.0
    %755 = vmatpush1.msra.mxu0 %v615
    %756 = vmatprep.subr.mxu0 0.0
    %757 = vmatpush1.msra.mxu0 %v616
    %758 = vmatprep.subr.mxu0 0.0
    %759 = vmatpush1.msra.mxu0 %v617
    %760 = vmatprep.subr.mxu0 0.0
    %761 = vmatpush1.msra.mxu0 %v618
    %762 = vmatprep.subr.mxu0 0.0
    %763 = vmatpush1.msra.mxu0 %v619
    %764 = vmatprep.subr.mxu0 0.0
    %765 = vmatpush1.msra.mxu0 %v620
    %766 = vmatprep.subr.mxu0 0.0
    %767 = vmatpush1.msra.mxu0 %v621
    %768 = vmatprep.subr.mxu0 0.0
    %769 = vmatpush1.msra.mxu0 %v622
    %770 = vmatprep.subr.mxu0 0.0
    %771 = vmatpush1.msra.mxu0 %v623
    %772 = vmatprep.subr.mxu0 0.0
    %773 = vmatpush1.msra.mxu0 %v624
    %774 = vmatprep.subr.mxu0 0.0
    %775 = vmatpush1.msra.mxu0 %v625
    %776 = vmatprep.subr.mxu0 0.0
    %777 = vmatpush1.msra.mxu0 %v626
    %778 = vmatprep.subr.mxu0 0.0
    %779 = vmatpush1.msra.mxu0 %v627
    %780 = vmatprep.subr.mxu0 0.0
    %781 = vmatpush1.msra.mxu0 %v628
    %782 = vmatprep.subr.mxu0 0.0
    %783 = vmatpush1.msra.mxu0 %v629
    %784 = vmatprep.subr.mxu0 0.0
    %785 = vmatpush1.msra.mxu0 %v630
    %786 = vmatprep.subr.mxu0 0.0
    %787 = vmatpush1.msra.mxu0 %v631
    %788 = vmatprep.mubr.f32.mxu0 %v555
    %789 = vmatmul.mubr.f32.gmra.mrb[0].mxu0 %v554
    %v790 = vpop.f32.mrb[0].mxu0
    %v791 = vadd.f32 %v706, %v790
    %v792 = vpop.f32.mrb[0].mxu0
    %793 = vmatprep.mubr.f32.mxu0 %v559
    %794 = vmatmul.mubr.f32.gmra.mrb[0].mxu0 %v558
    %v795 = vpop.f32.mrb[0].mxu0
    %v796 = vadd.f32 %v711, %v795
    %v797 = vpop.f32.mrb[0].mxu0
    %798 = vmatprep.mubr.f32.mxu0 %v563
    %799 = vmatmul.mubr.f32.gmra.mrb[0].mxu0 %v562
    %v800 = vpop.f32.mrb[0].mxu0
    %v801 = vadd.f32 %v716, %v800
    %v802 = vpop.f32.mrb[0].mxu0
    %803 = vmatprep.mubr.f32.mxu0 %v567
    %804 = vmatmul.mubr.f32.gmra.mrb[0].mxu0 %v566
    %v805 = vpop.f32.mrb[0].mxu0
    %v806 = vadd.f32 %v721, %v805
    %v807 = vpop.f32.mrb[0].mxu0
    %808 = vdwg.mxu0
    %v809 = vadd.f32 %v284, %v791
    %v810 = vadd.f32 %v285, %v796
    %v811 = vadd.f32 %v286, %v801
    %v812 = vadd.f32 %v287, %v806
    %v813 = vld [vmem:[%s9] sm:$0x1]
    %v814 = vld [vmem:[#allocation10] sm:$0x1]
    %815 = vadd.xlane.f32.xlu0 %v809
    %v816 = vpop.xlane.xlu0 %815
    %817 = vadd.xlane.f32.xlu0 %v810
    %v818 = vpop.xlane.xlu0 %817
    %819 = vadd.xlane.f32.xlu0 %v811
    %v820 = vpop.xlane.xlu0 %819
    %821 = vadd.xlane.f32.xlu0 %v812
    %v822 = vpop.xlane.xlu0 %821
    %v823 = vmul.f32 %v816, %v231
    %v824 = vmul.f32 %v818, %v231
    %v825 = vmul.f32 %v820, %v231
    %v826 = vmul.f32 %v822, %v231
    %v827 = vsub.f32 %v809, %v823
    %v828 = vsub.f32 %v810, %v824
    %v829 = vsub.f32 %v811, %v825
    %v830 = vsub.f32 %v812, %v826
    %v831 = vmul.f32 %v827, %v827
    %v832 = vmul.f32 %v828, %v828
    %v833 = vmul.f32 %v829, %v829
    %v834 = vmul.f32 %v830, %v830
    %835 = vadd.xlane.f32.xlu0 %v831
    %v836 = vpop.xlane.xlu0 %835
    %837 = vadd.xlane.f32.xlu0 %v832
    %v838 = vpop.xlane.xlu0 %837
    %839 = vadd.xlane.f32.xlu0 %v833
    %v840 = vpop.xlane.xlu0 %839
    %841 = vadd.xlane.f32.xlu0 %v834
    %v842 = vpop.xlane.xlu0 %841
    %v843 = vmul.f32 %v836, %v231
    %v844 = vmul.f32 %v838, %v231
    %v845 = vmul.f32 %v840, %v231
    %v846 = vmul.f32 %v842, %v231
    %v847 = vadd.f32 %v843, 1e-05
    %v848 = vadd.f32 %v844, 1e-05
    %v849 = vadd.f32 %v845, 1e-05
    %v850 = vadd.f32 %v846, 1e-05
    %v851 = vrsqrt.pop %v847
    %v852 = vrsqrt.pop %v848
    %v853 = vrsqrt.pop %v849
    %v854 = vrsqrt.pop %v850
    %v855 = vmul.f32 %v827, %v851
    %v856 = vmul.f32 %v828, %v852
    %v857 = vmul.f32 %v829, %v853
    %v858 = vmul.f32 %v830, %v854
    %v860 = vlaneseq
    %v861 = vshrl.u32 %v860, 7
    %v862 = vsub.s32 0, %v861
    %v863 = vrot.slane %v813, %v862
    %v865 = vmul.f32 %v855, %v863
    %v866 = vmul.f32 %v856, %v863
    %v867 = vmul.f32 %v857, %v863
    %v868 = vmul.f32 %v858, %v863
    %v870 = vlaneseq
    %v871 = vshrl.u32 %v870, 7
    %v872 = vsub.s32 0, %v871
    %v873 = vrot.slane %v814, %v872
    %v875 = vadd.f32 %v865, %v873
    %v876 = vadd.f32 %v866, %v873
    %v877 = vadd.f32 %v867, %v873
    %v878 = vadd.f32 %v868, %v873
    %879 = vst [vmem:[#allocation11] sm:$0xff] %v875
    %880 = vst [vmem:[#allocation11 + $0x8] sm:$0xff] %v876
    %881 = vst [vmem:[#allocation11 + $0x10] sm:$0xff] %v877
    %882 = vst [vmem:[#allocation11 + $0x18] sm:$0xff] %v878
    // Predicated region
    $region66: #{self_attention_block.1} parent=1 // pred_check
      _
    $region67: #{self_attention_block.1} parent=1 // pred_check_branch
      %884 = sbr.rel (0) target = $region69
    $region68: #{self_attention_block.1} parent=1 // pred_region
      %s886 = ssub.s32 512, 512
      %887 = vsyncadd [#allocation4], %s886
      %s888 = sshll.u32 [#allocation11], 4
      %s889 = int_to_ptr.vmem [resolvable:$true] %s888
      %894 = dma.vmem_to_hbm [thread:$0]  %s889, 512, %s11, [#allocation4], 128, 128, 8
    $region69: #{self_attention_block.1} parent=1 // pred_fallthru
      _
    // Predicated region
    $region70: #{self_attention_block.1} parent=1 // pred_check
      _
    $region71: #{self_attention_block.1} parent=1 // pred_check_branch
      %896 = sbr.rel (0) target = $region73
    $region72: #{self_attention_block.1} parent=1 // pred_region
      %897 = dma.done [#allocation4], 512
    $region73: #{self_attention_block.1} parent=1 // pred_fallthru
      _
    %898 = vsyncpa [#allocation3], 1
    %899 = vsyncpa [#allocation6], 1
    %900 = vsyncpa [#allocation9], 1
    %901 = vsyncpa [#allocation4], 1

</llo_original>
